<compile_context>
chip_gen: v6e
topology: v6e:2x2x1
jax: 0.10.0
libtpu: 0.0.40
codegen_flags: <defaults>
</compile_context>

<pallas_src>
import functools

import numpy as np

import jax
import jax.numpy as jnp
from jax import lax
from jax.experimental import pallas as pl
from jax.experimental.pallas import tpu as pltpu


# ----------------------------- host-side matrices ---------------------------

def _adaptive_pool_matrix(in_size, out_size):
    """P[i, k] = 1/|bin_i| for k in bin_i (PyTorch adaptive_avg_pool bins)."""
    P = np.zeros((out_size, in_size), dtype=np.float32)
    for i in range(out_size):
        s = (i * in_size) // out_size
        e = -((-(i + 1) * in_size) // out_size)  # ceil
        P[i, s:e] = 1.0 / float(e - s)
    return P


def _pool_matrix_fused(hin, win, hp, wp, batch):
    """Block-diagonal (batch*Hin*Win, batch*Hp*Wp) pooling matrix.

    (pooled)[c, b*Hp*Wp + p] = sum_q x[b, c, q] * P[p, q]; the whole batch is
    pooled with ONE matmul on channel-major lanes.
    """
    P = np.kron(_adaptive_pool_matrix(hin, hp),
                _adaptive_pool_matrix(win, wp))          # (Hp*Wp, Hin*Win)
    PT = P.T                                             # (Hin*Win, Hp*Wp)
    out = np.zeros((batch * hin * win, batch * hp * wp), np.float32)
    for b in range(batch):
        out[b * hin * win:(b + 1) * hin * win,
            b * hp * wp:(b + 1) * hp * wp] = PT
    return out


# ------------------------ roll-direction probe (one-off) --------------------

@functools.lru_cache(maxsize=None)
def _pltpu_roll_is_forward():
    """True iff pltpu.roll matches np.roll (elements move toward higher idx)."""
    def probe(x_ref, o_ref):
        o_ref[...] = pltpu.roll(x_ref[...], 1, axis=1)

    x = lax.broadcasted_iota(jnp.float32, (8, 128), 1)
    y = pl.pallas_call(
        probe, out_shape=jax.ShapeDtypeStruct((8, 128), jnp.float32))(x)
    return float(y[0, 1]) == 0.0


# ------------------------------ Pallas kernel -------------------------------

def skip_block_kernel(x_ref, pt_ref, w_ref, bias_ref, o_ref, *,
                      cin, hidden, cout, hp, wp, batch,
                      s_left, s_right, s_up, s_down, identity):
    hid2 = hidden // 2
    L = batch * hp * wp                       # lanes: b*hp*wp + h*wp + w

    # --- adaptive average pool: ONE bf16 matmul -> (cin, L) f32 -------------
    pooled = jnp.dot(x_ref[...], pt_ref[...],
                     preferred_element_type=jnp.float32)

    # --- packed parameters ---------------------------------------------------
    b1 = bias_ref[0:hidden]                               # (hidden, 1)
    b2 = bias_ref[hidden:2 * hidden]                      # (hidden, 1)
    b3 = bias_ref[2 * hidden:2 * hidden + cout]           # (cout, 1)

    w1 = w_ref[0:hidden, 0:cin]                           # (hidden, cin)
    w2 = w_ref[hidden:2 * hidden, 0:6 * hid2]             # (hidden, 6*hid2)
    w3 = w_ref[2 * hidden:2 * hidden + cout, 0:hidden]    # (cout, hidden)

    # --- conv1 (1x1, BN folded) + relu6: one matmul --------------------------
    t = jnp.dot(w1, pooled.astype(jnp.bfloat16),
                preferred_element_type=jnp.float32)
    t = jnp.clip(t + b1, 0.0, 6.0)                        # (hidden, L) f32
    h1 = t[0:hid2]                                        # horizontal branch
    h2 = t[hid2:hidden]                                   # vertical branch

    # --- (1,3)/(3,1) convs: roll-based im2col + ONE block matmul -------------
    lane = lax.broadcasted_iota(jnp.int32, (hid2, L), 1)
    w_idx = lane % wp
    h_idx = (lane // wp) % hp
    h1_l = jnp.where(w_idx >= 1, pltpu.roll(h1, s_left, axis=1), 0.0)
    h1_r = jnp.where(w_idx <= wp - 2, pltpu.roll(h1, s_right, axis=1), 0.0)
    h2_u = jnp.where(h_idx >= 1, pltpu.roll(h2, s_up, axis=1), 0.0)
    h2_d = jnp.where(h_idx <= hp - 2, pltpu.roll(h2, s_down, axis=1), 0.0)
    stacked = jnp.concatenate([h1_l, h1, h1_r, h2_u, h2, h2_d], axis=0)

    o12 = jnp.dot(w2, stacked.astype(jnp.bfloat16),
                  preferred_element_type=jnp.float32)
    o12 = jnp.clip(o12 + b2, 0.0, 6.0)                    # rows [0:hid2]=o1

    # --- conv3 (1x1, BN folded): one matmul ----------------------------------
    out = jnp.dot(w3, o12.astype(jnp.bfloat16),
                  preferred_element_type=jnp.float32) + b3

    if identity:                         # residual adds the pooled input
        out = out + pooled

    # --- single lane-dense store (cout, L) ------------------------------------
    o_ref[...] = out.astype(o_ref.dtype)


# ------------------------------ wrapper -------------------------------------

def skip_block_half(x_nchw, params, *, size, stride):
    n, cin, hin, win = x_nchw.shape
    hidden = params["w1"].shape[1]
    hid2 = hidden // 2
    cout = params["w3"].shape[1]
    identity = (stride == 1) and (cin == cout)

    hp = wp = size
    L = n * hp * wp

    # Roll shifts so that output[l] = input[l + delta]; direction probed once.
    fwd = _pltpu_roll_is_forward()

    def roll_shift(delta):
        return (-delta) % L if fwd else delta % L

    # Structural pooling matrix (exact in bf16 for power-of-two bins).
    pt = jnp.asarray(_pool_matrix_fused(hin, win, hp, wp, n)
                     ).astype(jnp.bfloat16)

    # BN-folded, output-channel-major weights.
    w1_full = (params["w1"] * params["s1"]).T                       # (hidden, cin)
    wht = jnp.transpose(params["wh"] * params["s2h"], (0, 2, 1))    # (3, o, i)
    wvt = jnp.transpose(params["wv"] * params["s2v"], (0, 2, 1))
    wh_cat = jnp.concatenate([wht[0], wht[1], wht[2]], axis=1)      # (hid2, 3*hid2)
    wv_cat = jnp.concatenate([wvt[0], wvt[1], wvt[2]], axis=1)
    w2_block = jnp.zeros((hidden, 6 * hid2), jnp.float32)
    w2_block = w2_block.at[0:hid2, 0:3 * hid2].set(wh_cat)
    w2_block = w2_block.at[hid2:hidden, 3 * hid2:6 * hid2].set(wv_cat)
    w3_full = (params["w3"] * params["s3"]).T                       # (cout, hidden)

    # Pack all weights into one bf16 tensor (row blocks at 8-sublane offsets).
    wcols = max(cin, 6 * hid2, hidden)
    wrows = 2 * hidden + cout
    w_pack = jnp.zeros((wrows, wcols), jnp.float32)
    w_pack = w_pack.at[0:hidden, 0:cin].set(w1_full)
    w_pack = w_pack.at[hidden:2 * hidden, 0:6 * hid2].set(w2_block)
    w_pack = w_pack.at[2 * hidden:2 * hidden + cout, 0:hidden].set(w3_full)
    w_pack = w_pack.astype(jnp.bfloat16)

    # All per-channel BN biases in one f32 vector.
    bias = jnp.concatenate([params["b1"].ravel(),
                            params["b2h"].ravel(), params["b2v"].ravel(),
                            params["b3"].ravel()]).reshape(-1, 1)

    # Channel-major input slab (cin, n*Hin*Win): 16 KB host-side transpose.
    x_t = jnp.transpose(x_nchw, (1, 0, 2, 3)).reshape(cin, n * hin * win)
    x_t = x_t.astype(jnp.bfloat16)

    kernel = functools.partial(
        skip_block_kernel, cin=cin, hidden=hidden, cout=cout,
        hp=hp, wp=wp, batch=n, identity=identity,
        s_left=roll_shift(-1), s_right=roll_shift(+1),
        s_up=roll_shift(-wp), s_down=roll_shift(+wp))

    def full_spec(shape):
        nd = len(shape)
        return pl.BlockSpec(shape, lambda i, _nd=nd: (0,) * _nd)

    flops = 2 * L * (cin * (n * hin * win) + hidden * cin
                     + hidden * 6 * hid2 + cout * hidden)
    bytes_accessed = (2 * (int(x_t.size) + int(pt.size) + int(w_pack.size))
                      + 4 * (int(bias.size) + cout * L))

    out = pl.pallas_call(
        kernel,
        out_shape=jax.ShapeDtypeStruct((cout, L), jnp.float32),
        grid=(1,),
        in_specs=[full_spec(tuple(x_t.shape)), full_spec(tuple(pt.shape)),
                  full_spec(tuple(w_pack.shape)), full_spec(tuple(bias.shape))],
        out_specs=full_spec((cout, L)),
        compiler_params=pltpu.CompilerParams(
            dimension_semantics=("arbitrary",)),
        cost_estimate=pl.CostEstimate(flops=int(flops), transcendentals=0,
                                      bytes_accessed=int(bytes_accessed)),
    )(x_t, pt, w_pack, bias)

    # Lane-dense (cout, n*hp*wp) -> NCHW; strided conv == dense conv subsample.
    out4 = out.reshape(cout, n, hp, wp)
    if stride > 1:
        out4 = out4[:, :, ::stride, ::stride]
    return jnp.transpose(out4, (1, 0, 2, 3))


# --------------------------- params (deterministic) --------------------------

def init_params(key, inp, hidden_dim, out_c):
    hid2 = hidden_dim // 2
    ks = jax.random.split(key, 8)

    def bn_fold(k, c):
        k1, k2, k3, k4 = jax.random.split(k, 4)
        gamma = jax.random.uniform(k1, (c,), jnp.float32, 0.5, 1.5)
        beta = 0.1 * jax.random.normal(k2, (c,), jnp.float32)
        mean = 0.1 * jax.random.normal(k3, (c,), jnp.float32)
        var = jax.random.uniform(k4, (c,), jnp.float32, 0.5, 1.5)
        scale = gamma / jnp.sqrt(var + 1e-5)
        bias = beta - mean * scale
        return scale.reshape(1, c), bias.reshape(1, c)

    w1 = 0.2 * jax.random.normal(ks[0], (inp, hidden_dim), jnp.float32)
    s1, b1 = bn_fold(ks[1], hidden_dim)
    wh = 0.2 * jax.random.normal(ks[2], (3, hid2, hid2), jnp.float32)
    s2h, b2h = bn_fold(ks[3], hid2)
    wv = 0.2 * jax.random.normal(ks[4], (3, hid2, hid2), jnp.float32)
    s2v, b2v = bn_fold(ks[5], hid2)
    w3 = 0.2 * jax.random.normal(ks[6], (hidden_dim, out_c), jnp.float32)
    s3, b3 = bn_fold(ks[7], out_c)
    return dict(w1=w1, s1=s1, b1=b1, wh=wh, s2h=s2h, b2h=b2h,
                wv=wv, s2v=s2v, b2v=b2v, w3=w3, s3=s3, b3=b3)


# --------------------------- pure-JAX reference ------------------------------

def _adaptive_avg_pool_nhwc(x, out_hw):
    n, h, w, c = x.shape
    ho, wo = out_hw
    rows = []
    for i in range(ho):
        h0 = (i * h) // ho
        h1 = -((-(i + 1) * h) // ho)
        cols = []
        for j in range(wo):
            w0 = (j * w) // wo
            w1 = -((-(j + 1) * w) // wo)
            cols.append(jnp.mean(x[:, h0:h1, w0:w1, :], axis=(1, 2)))
        rows.append(jnp.stack(cols, axis=1))
    return jnp.stack(rows, axis=1)


def reference(x_nchw, params, *, size, stride):
    x = jnp.transpose(x_nchw, (0, 2, 3, 1))
    cin = x.shape[-1]
    hid2 = params["w1"].shape[1] // 2
    dn = ("NHWC", "HWIO", "NHWC")

    def conv(z, w, strides, padding):
        return lax.conv_general_dilated(z, w, strides, padding,
                                        dimension_numbers=dn)

    xp = _adaptive_avg_pool_nhwc(x, (size, size))
    t = conv(xp, params["w1"][None, None], (1, 1), ((0, 0), (0, 0)))
    t = jnp.clip(t * params["s1"] + params["b1"], 0.0, 6.0)
    h1, h2 = t[..., :hid2], t[..., hid2:]
    o1 = conv(h1, params["wh"][None], (stride, stride), ((0, 0), (1, 1)))
    o1 = jnp.clip(o1 * params["s2h"] + params["b2h"], 0.0, 6.0)
    o2 = conv(h2, params["wv"][:, None], (stride, stride), ((1, 1), (0, 0)))
    o2 = jnp.clip(o2 * params["s2v"] + params["b2v"], 0.0, 6.0)
    cat = jnp.concatenate([o1, o2], axis=-1)
    out = conv(cat, params["w3"][None, None], (1, 1), ((0, 0), (0, 0)))
    out = out * params["s3"] + params["b3"]
    if stride == 1 and cin == out.shape[-1]:
        out = out + xp
    return jnp.transpose(out, (0, 3, 1, 2))


# ------------------------------- main ----------------------------------------

if __name__ == "__main__":
    # SkipBlockHalf(inp=8, hidden_dim=16, out=8, kernel_size=3, stride=1, size=8)
    # (kernel_size is unused by the PyTorch forward)
    B, CIN, HIN, WIN = 2, 8, 16, 16
    HIDDEN, COUT, SIZE, STRIDE = 16, 8, 8, 1

    key = jax.random.PRNGKey(0)
    kx, kp = jax.random.split(key)
    x = jax.random.normal(kx, (B, CIN, HIN, WIN), jnp.float32)   # NCHW input
    params = init_params(kp, CIN, HIDDEN, COUT)

    y = skip_block_half(x, params, size=SIZE, stride=STRIDE)
    y = jax.block_until_ready(y)

    y_ref = reference(x, params, size=SIZE, stride=STRIDE)
    np.testing.assert_allclose(np.asarray(y), np.asarray(y_ref),
                               rtol=2e-2, atol=2e-2)

    print("KERNEL_OK")
</pallas_src>

<mosaic_0001>
module attributes {stable_mosaic.version = 11 : i64} {
  func.func @probe(%arg0: memref<8x128xf32, #tpu.memory_space<vmem>>, %arg1: memref<8x128xf32, #tpu.memory_space<vmem>>) attributes {dimension_semantics = [], scalar_prefetch = 0 : i64, scratch_operands = 0 : i64, tpu.core_type = #tpu.core_type<tc>} {
    %c0 = arith.constant 0 : index
    %c0_0 = arith.constant 0 : index
    %0 = vector.load %arg0[%c0, %c0_0] : memref<8x128xf32, #tpu.memory_space<vmem>>, vector<8x128xf32>
    %c1_i32 = arith.constant 1 : i32
    %1 = tpu.dynamic_rotate %0 by %c1_i32 dim 1 : vector<8x128xf32>, i32 -> vector<8x128xf32>
    %c0_1 = arith.constant 0 : index
    %c0_2 = arith.constant 0 : index
    %2 = vector.load %arg1[%c0_1, %c0_2] : memref<8x128xf32, #tpu.memory_space<vmem>>, vector<8x128xf32>
    tpu.vector_store %arg1[%c0_1, %c0_2], %1 {strides = array<i32>} : memref<8x128xf32, #tpu.memory_space<vmem>>, vector<8x128xf32>,
    return
  }
}

</mosaic_0001>

<llo_original>
// kernel: tpu_custom_call.1
$region0: #{tpu_custom_call.1}
  #allocation0 [shape = 'u32[]', space=smem, size = 0x4, offset = 0x4, fixed_abs, tag = 'smem constant byte address 0x4 - core index']
  #allocation1 [shape = 'u32[144,128]{1,0:T(1,128)}', space=vmem, size = 0x12000, scoped, tag = 'internal scratch']
  %s0 = inlined_call_operand.hbm [shape: f32[8,128], index: 0, kind: input, shape index: {}]
  %s1 = inlined_call_operand.hbm [shape: f32[8,128], index: 1, kind: output, shape index: {}]
  %s2 = sld [smem:[#allocation0]]
  $region18: #{tpu_custom_call.1} parent=0
    _
  %s4 = ssub.s32 1, %s2
  %s5 = scalar_select 0, %s4, %s2
  $region1: #{tpu_custom_call.1} parent=0
    #allocation2 [shape = 'u8[4096]{0}', space=vmem, size = 0x1000, scoped, tag = 'input window, operand 0, single buffered']
    #allocation3 [shape = 's32[1]{0}', space=sflag, size = 0x4, scoped, tag = 'scoped memory for tpu_custom_call.1']
    #allocation4 [shape = 's32[1]{0}', space=sflag, size = 0x4, scoped, tag = 'scoped memory for tpu_custom_call.1']
    #allocation5 [shape = 'u8[4096]{0}', space=vmem, size = 0x1000, scoped, tag = 'output window, operand 0, single buffered']
    %6 = vsyncpa [#allocation3], 0
    %7 = vsyncpa [#allocation4], 0
    // Predicated region
    $region2: #{tpu_custom_call.1} parent=1 // pred_check
      _
    $region3: #{tpu_custom_call.1} parent=1 // pred_check_branch
      %9 = sbr.rel (0) target = $region5
    $region4: #{tpu_custom_call.1} parent=1 // pred_region
      %s11 = ssub.s32 128, 128
      %12 = vsyncadd [#allocation3], %s11
      %s14 = sshll.u32 [#allocation2], 4
      %s15 = int_to_ptr.vmem [resolvable:$true] %s14
      %17 = dma.hbm_to_vmem [thread:$0]  %s0, 128, %s15, [#allocation3]
    $region5: #{tpu_custom_call.1} parent=1 // pred_fallthru
      _
    // Predicated region
    $region6: #{tpu_custom_call.1} parent=1 // pred_check
      _
    $region7: #{tpu_custom_call.1} parent=1 // pred_check_branch
      %19 = sbr.rel (0) target = $region9
    $region8: #{tpu_custom_call.1} parent=1 // pred_region
      %20 = dma.done [#allocation3], 128
    $region9: #{tpu_custom_call.1} parent=1 // pred_fallthru
      _
    %v21 = vld [vmem:[#allocation2] sm:$0xff]
    %22 = vrot.lane.b32.xlu0 %v21, 1
    %v23 = vpop.permute.xlu0 %22
    %24 = vst [vmem:[#allocation5] sm:$0xff] %v23
    // Predicated region
    $region10: #{tpu_custom_call.1} parent=1 // pred_check
      _
    $region11: #{tpu_custom_call.1} parent=1 // pred_check_branch
      %26 = sbr.rel (0) target = $region13
    $region12: #{tpu_custom_call.1} parent=1 // pred_region
      %s28 = ssub.s32 128, 128
      %29 = vsyncadd [#allocation4], %s28
      %s31 = sshll.u32 [#allocation5], 4
      %s32 = int_to_ptr.vmem [resolvable:$true] %s31
      %34 = dma.vmem_to_hbm [thread:$0]  %s32, 128, %s1, [#allocation4]
    $region13: #{tpu_custom_call.1} parent=1 // pred_fallthru
      _
    // Predicated region
    $region14: #{tpu_custom_call.1} parent=1 // pred_check
      _
    $region15: #{tpu_custom_call.1} parent=1 // pred_check_branch
      %36 = sbr.rel (0) target = $region17
    $region16: #{tpu_custom_call.1} parent=1 // pred_region
      %37 = dma.done [#allocation4], 128
    $region17: #{tpu_custom_call.1} parent=1 // pred_fallthru
      _
    %38 = vsyncpa [#allocation3], 1
    %39 = vsyncpa [#allocation4], 1

</llo_original>
